<compile_context>
chip_gen: v7x
topology: tpu7x:2x2x1
jax: 0.10.0
libtpu: 0.0.40
codegen_flags: <defaults>
</compile_context>

<pallas_src>
import jax
import jax.numpy as jnp
from jax.experimental import pallas as pl
from jax.experimental.pallas import tpu as pltpu

HIDDEN = 64


def simple_nn_kernel(x_ref, w1_ref, b1_ref, w2_ref, b2_ref, w3_ref, b3_ref, o_ref):
    x = x_ref[...]                                   # [1, TILE_B]  (batch on lanes)

    # Layer 1: Linear(1, 64). K=1 contraction == outer product -> pure VPU.
    #   h1[f, b] = relu(w1[f, 0] * x[0, b] + b1[f, 0])
    h1 = jnp.maximum(w1_ref[...] * x + b1_ref[...], 0.0)          # [64, TILE_B]

    # Layer 2: Linear(64, 64). The only real matmul -> MXU, f32 accumulate.
    h2 = jnp.dot(w2_ref[...], h1, preferred_element_type=jnp.float32) + b2_ref[...]
    h2 = jnp.maximum(h2, 0.0)                                      # [64, TILE_B]

    # Layer 3: Linear(64, 1). N=1 -> VPU multiply + sublane reduce (XLU), not MXU.
    out = jnp.sum(w3_ref[...] * h2, axis=0, keepdims=True) + b3_ref[0, 0]  # [1, TILE_B]

    o_ref[...] = out.astype(o_ref.dtype)             # lane-dense store


def simple_nn_forward(x, params, *, tile_b=256):
    """x: [B, 1] float32. Returns [B, 1] float32."""
    w1, b1, w2, b2, w3, b3 = params
    B = x.shape[0]

    # Present the input lane-dense: [B, 1] -> [1, B], pad batch to a tile multiple.
    xt = x.reshape(1, B)
    Bp = pl.cdiv(B, tile_b) * tile_b
    if Bp != B:
        xt = jnp.pad(xt, ((0, 0), (0, Bp - B)))
    num_tiles = Bp // tile_b

    out_t = pl.pallas_call(
        simple_nn_kernel,
        out_shape=jax.ShapeDtypeStruct((1, Bp), jnp.float32),
        grid=(num_tiles,),
        in_specs=[
            pl.BlockSpec((1, tile_b), lambda i: (0, i)),        # x tile (lane-dense)
            pl.BlockSpec((HIDDEN, 1), lambda i: (0, 0)),        # w1 (resident)
            pl.BlockSpec((HIDDEN, 1), lambda i: (0, 0)),        # b1 (resident)
            pl.BlockSpec((HIDDEN, HIDDEN), lambda i: (0, 0)),   # w2 (resident)
            pl.BlockSpec((HIDDEN, 1), lambda i: (0, 0)),        # b2 (resident)
            pl.BlockSpec((HIDDEN, 1), lambda i: (0, 0)),        # w3 (resident)
            pl.BlockSpec(memory_space=pltpu.MemorySpace.SMEM),  # b3 scalar in SMEM
        ],
        out_specs=pl.BlockSpec((1, tile_b), lambda i: (0, i)),  # lane-dense output
        compiler_params=pltpu.CompilerParams(
            dimension_semantics=("parallel",),                  # megacore-shard batch
        ),
    )(xt, w1, b1, w2, b2, w3, b3)

    return out_t[:, :B].reshape(B, 1)


def init_params(key):
    # Mimics nn.Linear's uniform(-1/sqrt(fan_in), 1/sqrt(fan_in)) init,
    # stored in the [out, in] / column layout the kernel expects.
    def linear(key, fan_in, fan_out):
        kw, kb = jax.random.split(key)
        bound = 1.0 / jnp.sqrt(jnp.float32(fan_in))
        w = jax.random.uniform(kw, (fan_out, fan_in), jnp.float32, -bound, bound)
        b = jax.random.uniform(kb, (fan_out, 1), jnp.float32, -bound, bound)
        return w, b

    k1, k2, k3 = jax.random.split(key, 3)
    w1, b1 = linear(k1, 1, HIDDEN)          # w1: [64, 1], b1: [64, 1]
    w2, b2 = linear(k2, HIDDEN, HIDDEN)     # w2: [64, 64] (out, in), b2: [64, 1]
    w3r, b3r = linear(k3, HIDDEN, 1)        # w3r: [1, 64], b3r: [1, 1]
    w3 = w3r.reshape(HIDDEN, 1)             # column layout for the kernel reduce
    b3 = b3r.reshape(1, 1)
    return (w1, b1, w2, b2, w3, b3)


if __name__ == "__main__":
    key = jax.random.PRNGKey(0)
    kx, kp = jax.random.split(key)

    batch = 8
    x = jax.random.normal(kx, (batch, 1), jnp.float32)  # SimpleNN takes 1 input feature
    params = init_params(kp)

    out = simple_nn_forward(x, params)
    out = jax.block_until_ready(out)

    # Reference in plain JAX (standard row layout, same math as the PyTorch module).
    w1, b1, w2, b2, w3, b3 = params
    ref = jnp.maximum(x @ w1.T + b1.T, 0.0)
    ref = jnp.maximum(ref @ w2.T + b2.T, 0.0)
    ref = ref @ w3 + b3[0, 0]

    assert out.shape == (batch, 1)
    assert jnp.allclose(out, ref, atol=1e-5, rtol=1e-5)

    print("KERNEL_OK")
</pallas_src>

<mosaic_0001>
module attributes {stable_mosaic.version = 11 : i64} {
  func.func @simple_nn_kernel(%arg0: i32, %arg1: memref<1x256xf32, #tpu.memory_space<vmem>>, %arg2: memref<64x1xf32, #tpu.memory_space<vmem>>, %arg3: memref<64x1xf32, #tpu.memory_space<vmem>>, %arg4: memref<64x64xf32, #tpu.memory_space<vmem>>, %arg5: memref<64x1xf32, #tpu.memory_space<vmem>>, %arg6: memref<64x1xf32, #tpu.memory_space<vmem>>, %arg7: memref<1x1xf32, #tpu.memory_space<smem>>, %arg8: memref<1x256xf32, #tpu.memory_space<vmem>>) attributes {dimension_semantics = [#tpu.dimension_semantics<parallel>], iteration_bounds = array<i64: 1>, scalar_prefetch = 0 : i64, scratch_operands = 0 : i64, tpu.core_type = #tpu.core_type<tc>, window_params = [{transform_indices = @transform_0, window_bounds = array<i64: 1, 256>}, {pipeline_mode = #tpu.pipeline_mode<synchronous>, transform_indices = @transform_1, window_bounds = array<i64: 64, 1>}, {pipeline_mode = #tpu.pipeline_mode<synchronous>, transform_indices = @transform_2, window_bounds = array<i64: 64, 1>}, {pipeline_mode = #tpu.pipeline_mode<synchronous>, transform_indices = @transform_3, window_bounds = array<i64: 64, 64>}, {pipeline_mode = #tpu.pipeline_mode<synchronous>, transform_indices = @transform_4, window_bounds = array<i64: 64, 1>}, {pipeline_mode = #tpu.pipeline_mode<synchronous>, transform_indices = @transform_5, window_bounds = array<i64: 64, 1>}, {transform_indices = @transform_6, window_bounds = array<i64: 1, 1>}, {transform_indices = @transform_7, window_bounds = array<i64: 1, 256>}]} {
    %c0 = arith.constant 0 : index
    %c0_0 = arith.constant 0 : index
    %0 = vector.load %arg1[%c0, %c0_0] : memref<1x256xf32, #tpu.memory_space<vmem>>, vector<1x256xf32>
    %c0_1 = arith.constant 0 : index
    %c0_2 = arith.constant 0 : index
    %1 = vector.load %arg2[%c0_1, %c0_2] : memref<64x1xf32, #tpu.memory_space<vmem>>, vector<64x1xf32>
    %2 = vector.broadcast %1 : vector<64x1xf32> to vector<64x256xf32>
    %3 = vector.broadcast %0 : vector<1x256xf32> to vector<64x256xf32>
    %4 = arith.mulf %2, %3 : vector<64x256xf32>
    %c0_3 = arith.constant 0 : index
    %c0_4 = arith.constant 0 : index
    %5 = vector.load %arg3[%c0_3, %c0_4] : memref<64x1xf32, #tpu.memory_space<vmem>>, vector<64x1xf32>
    %6 = vector.broadcast %5 : vector<64x1xf32> to vector<64x256xf32>
    %7 = arith.addf %4, %6 : vector<64x256xf32>
    %cst = arith.constant 0.000000e+00 : f32
    %8 = vector.broadcast %cst : f32 to vector<64x256xf32>
    %9 = arith.maximumf %7, %8 : vector<64x256xf32>
    %c0_5 = arith.constant 0 : index
    %c0_6 = arith.constant 0 : index
    %10 = vector.load %arg4[%c0_5, %c0_6] : memref<64x64xf32, #tpu.memory_space<vmem>>, vector<64x64xf32>
    %cst_7 = arith.constant dense<0.000000e+00> : vector<64x256xf32>
    %11 = tpu.matmul %10, %9, %cst_7 {dimension_numbers = #tpu.dot_dimension_numbers<[1], [0], [0], [1], [0, 0, 1, 1], [], []>} : vector<64x64xf32>, vector<64x256xf32>, vector<64x256xf32> -> vector<64x256xf32>
    %c0_8 = arith.constant 0 : index
    %c0_9 = arith.constant 0 : index
    %12 = vector.load %arg5[%c0_8, %c0_9] : memref<64x1xf32, #tpu.memory_space<vmem>>, vector<64x1xf32>
    %13 = vector.broadcast %12 : vector<64x1xf32> to vector<64x256xf32>
    %14 = arith.addf %11, %13 : vector<64x256xf32>
    %cst_10 = arith.constant 0.000000e+00 : f32
    %15 = vector.broadcast %cst_10 : f32 to vector<64x256xf32>
    %16 = arith.maximumf %14, %15 : vector<64x256xf32>
    %c0_11 = arith.constant 0 : index
    %c0_12 = arith.constant 0 : index
    %17 = vector.load %arg6[%c0_11, %c0_12] : memref<64x1xf32, #tpu.memory_space<vmem>>, vector<64x1xf32>
    %18 = vector.broadcast %17 : vector<64x1xf32> to vector<64x256xf32>
    %19 = arith.mulf %18, %16 : vector<64x256xf32>
    %cst_13 = arith.constant dense<0.000000e+00> : vector<256xf32>
    %20 = vector.multi_reduction <add>, %19, %cst_13 [0] : vector<64x256xf32> to vector<256xf32>
    %21 = vector.shape_cast %20 : vector<256xf32> to vector<1x256xf32>
    %c0_14 = arith.constant 0 : index
    %c0_15 = arith.constant 0 : index
    %22 = memref.load %arg7[%c0_14, %c0_15] : memref<1x1xf32, #tpu.memory_space<smem>>
    %23 = vector.broadcast %22 : f32 to vector<1x256xf32>
    %24 = arith.addf %21, %23 : vector<1x256xf32>
    %c0_16 = arith.constant 0 : index
    %c0_17 = arith.constant 0 : index
    %25 = vector.load %arg8[%c0_16, %c0_17] : memref<1x256xf32, #tpu.memory_space<vmem>>, vector<1x256xf32>
    tpu.vector_store %arg8[%c0_16, %c0_17], %24 {strides = array<i32>} : memref<1x256xf32, #tpu.memory_space<vmem>>, vector<1x256xf32>,
    return
  }
  func.func @transform_0(%arg0: i32) -> (i32, i32) {
    %c0_i32 = arith.constant 0 : i32
    %c0_i32_0 = arith.constant 0 : i32
    return %c0_i32, %arg0 : i32, i32
  }
  func.func @transform_1(%arg0: i32) -> (i32, i32) {
    %c0_i32 = arith.constant 0 : i32
    %c0_i32_0 = arith.constant 0 : i32
    %c0_i32_1 = arith.constant 0 : i32
    return %c0_i32, %c0_i32_0 : i32, i32
  }
  func.func @transform_2(%arg0: i32) -> (i32, i32) {
    %c0_i32 = arith.constant 0 : i32
    %c0_i32_0 = arith.constant 0 : i32
    %c0_i32_1 = arith.constant 0 : i32
    return %c0_i32, %c0_i32_0 : i32, i32
  }
  func.func @transform_3(%arg0: i32) -> (i32, i32) {
    %c0_i32 = arith.constant 0 : i32
    %c0_i32_0 = arith.constant 0 : i32
    %c0_i32_1 = arith.constant 0 : i32
    return %c0_i32, %c0_i32_0 : i32, i32
  }
  func.func @transform_4(%arg0: i32) -> (i32, i32) {
    %c0_i32 = arith.constant 0 : i32
    %c0_i32_0 = arith.constant 0 : i32
    %c0_i32_1 = arith.constant 0 : i32
    return %c0_i32, %c0_i32_0 : i32, i32
  }
  func.func @transform_5(%arg0: i32) -> (i32, i32) {
    %c0_i32 = arith.constant 0 : i32
    %c0_i32_0 = arith.constant 0 : i32
    %c0_i32_1 = arith.constant 0 : i32
    return %c0_i32, %c0_i32_0 : i32, i32
  }
  func.func @transform_6(%arg0: i32) -> (i32, i32) {
    %c0_i32 = arith.constant 0 : i32
    %c0_i32_0 = arith.constant 0 : i32
    %c0_i32_1 = arith.constant 0 : i32
    return %c0_i32, %c0_i32_0 : i32, i32
  }
  func.func @transform_7(%arg0: i32) -> (i32, i32) {
    %c0_i32 = arith.constant 0 : i32
    %c0_i32_0 = arith.constant 0 : i32
    return %c0_i32, %arg0 : i32, i32
  }
}

</mosaic_0001>

<llo_original>
// kernel: tpu_custom_call.1
$region0: #{tpu_custom_call.1}
  #allocation0 [shape = 'u32[]', space=smem, size = 0x4, offset = 0x4, fixed_abs, tag = 'smem constant byte address 0x4 - core index']
  #allocation1 [shape = 'u32[144,128]{1,0:T(1,128)}', space=vmem, size = 0x12000, scoped, tag = 'internal scratch']
  #allocation2 [shape = 'f32[1,1]{1,0:T(1,128)S(6)}', space=smem, size = 0x200, scoped, tag = 'scoped memory for tpu_custom_call.1']
  %s0 = inlined_call_operand.vmem [shape: f32[1,256], index: 0, kind: input, shape index: {}]
  %s1 = inlined_call_operand.vmem [shape: f32[64,1], index: 1, kind: input, shape index: {}]
  %s2 = inlined_call_operand.vmem [shape: f32[64,1], index: 2, kind: input, shape index: {}]
  %s3 = inlined_call_operand.vmem [shape: f32[64,64], index: 3, kind: input, shape index: {}]
  %s4 = inlined_call_operand.vmem [shape: f32[64,1], index: 4, kind: input, shape index: {}]
  %s5 = inlined_call_operand.vmem [shape: f32[64,1], index: 5, kind: input, shape index: {}]
  %s6 = inlined_call_operand.<no memory space> [shape: f32[1,1], index: 6, kind: input, shape index: {}]
  %s7 = inlined_call_operand.hbm [shape: f32[1,256], index: 7, kind: output, shape index: {}]
  %s8 = sld [smem:[#allocation0]]
  $region38: #{tpu_custom_call.1} parent=0
    _
  %s10 = ssub.s32 1, %s8
  %s11 = scalar_select 0, %s10, %s8
  %12 = sst [smem:[#allocation2]] %s6
  $region1: #{tpu_custom_call.1} parent=0
    #allocation3 [shape = 'u8[1024]{0}', space=vmem, size = 0x400, scoped, tag = 'output window, operand 0, single buffered']
    #allocation4 [shape = 's32[1]{0}', space=sflag, size = 0x4, scoped, tag = 'scoped memory for tpu_custom_call.1']
    %13 = vsyncpa [#allocation4], 0
    // Predicated region
    $region2: #{tpu_custom_call.1} parent=1 // pred_check
      _
    $region3: #{tpu_custom_call.1} parent=1 // pred_check_branch
      %15 = sbr.rel (0) target = $region5
    $region4: #{tpu_custom_call.1} parent=1 // pred_region
      _
    $region5: #{tpu_custom_call.1} parent=1 // pred_fallthru
      _
    // Predicated region
    $region6: #{tpu_custom_call.1} parent=1 // pred_check
      _
    $region7: #{tpu_custom_call.1} parent=1 // pred_check_branch
      %17 = sbr.rel (0) target = $region9
    $region8: #{tpu_custom_call.1} parent=1 // pred_region
      _
    $region9: #{tpu_custom_call.1} parent=1 // pred_fallthru
      _
    // Predicated region
    $region10: #{tpu_custom_call.1} parent=1 // pred_check
      _
    $region11: #{tpu_custom_call.1} parent=1 // pred_check_branch
      %19 = sbr.rel (0) target = $region13
    $region12: #{tpu_custom_call.1} parent=1 // pred_region
      _
    $region13: #{tpu_custom_call.1} parent=1 // pred_fallthru
      _
    // Predicated region
    $region14: #{tpu_custom_call.1} parent=1 // pred_check
      _
    $region15: #{tpu_custom_call.1} parent=1 // pred_check_branch
      %21 = sbr.rel (0) target = $region17
    $region16: #{tpu_custom_call.1} parent=1 // pred_region
      _
    $region17: #{tpu_custom_call.1} parent=1 // pred_fallthru
      _
    // Predicated region
    $region18: #{tpu_custom_call.1} parent=1 // pred_check
      _
    $region19: #{tpu_custom_call.1} parent=1 // pred_check_branch
      %23 = sbr.rel (0) target = $region21
    $region20: #{tpu_custom_call.1} parent=1 // pred_region
      _
    $region21: #{tpu_custom_call.1} parent=1 // pred_fallthru
      _
    // Predicated region
    $region22: #{tpu_custom_call.1} parent=1 // pred_check
      _
    $region23: #{tpu_custom_call.1} parent=1 // pred_check_branch
      %25 = sbr.rel (0) target = $region25
    $region24: #{tpu_custom_call.1} parent=1 // pred_region
      _
    $region25: #{tpu_custom_call.1} parent=1 // pred_fallthru
      _
    // Predicated region
    $region26: #{tpu_custom_call.1} parent=1 // pred_check
      _
    $region27: #{tpu_custom_call.1} parent=1 // pred_check_branch
      %27 = sbr.rel (0) target = $region29
    $region28: #{tpu_custom_call.1} parent=1 // pred_region
      _
    $region29: #{tpu_custom_call.1} parent=1 // pred_fallthru
      _
    %v28 = vld [vmem:[%s0] sm:$0x3]
    %v29 = vld [vmem:[%s1] sm:$0xff]
    %v30 = vld [vmem:[%s1 + $0x8] sm:$0xff]
    %v31 = vld [vmem:[%s1 + $0x10] sm:$0xff]
    %v32 = vld [vmem:[%s1 + $0x18] sm:$0xff]
    %v33 = vld [vmem:[%s1 + $0x20] sm:$0xff]
    %v34 = vld [vmem:[%s1 + $0x28] sm:$0xff]
    %v35 = vld [vmem:[%s1 + $0x30] sm:$0xff]
    %v36 = vld [vmem:[%s1 + $0x38] sm:$0xff]
    %38 = vset.pattern.permute.xlu0 0
    %39 = vperm.xlu0 %38, %v29
    %v40 = vpop.permute.xlu0 %39
    %43 = vset.pattern.permute.xlu0 0
    %44 = vperm.xlu0 %43, %v30
    %v45 = vpop.permute.xlu0 %44
    %48 = vset.pattern.permute.xlu0 0
    %49 = vperm.xlu0 %48, %v31
    %v50 = vpop.permute.xlu0 %49
    %53 = vset.pattern.permute.xlu0 0
    %54 = vperm.xlu0 %53, %v32
    %v55 = vpop.permute.xlu0 %54
    %58 = vset.pattern.permute.xlu0 0
    %59 = vperm.xlu0 %58, %v33
    %v60 = vpop.permute.xlu0 %59
    %63 = vset.pattern.permute.xlu0 0
    %64 = vperm.xlu0 %63, %v34
    %v65 = vpop.permute.xlu0 %64
    %68 = vset.pattern.permute.xlu0 0
    %69 = vperm.xlu0 %68, %v35
    %v70 = vpop.permute.xlu0 %69
    %73 = vset.pattern.permute.xlu0 0
    %74 = vperm.xlu0 %73, %v36
    %v75 = vpop.permute.xlu0 %74
    %v78 = vlaneseq
    %v79 = vshrl.u32 %v78, 7
    %v80 = vsub.s32 0, %v79
    %v81 = vrot.slane %v28, %v80
    %v82 = vlaneseq
    %v83 = vshrl.u32 %v82, 7
    %v84 = vsub.s32 1, %v83
    %v85 = vrot.slane %v28, %v84
    %v88 = vmul.f32 %v40, %v81
    %v89 = vmul.f32 %v40, %v85
    %v90 = vmul.f32 %v45, %v81
    %v91 = vmul.f32 %v45, %v85
    %v92 = vmul.f32 %v50, %v81
    %v93 = vmul.f32 %v50, %v85
    %v94 = vmul.f32 %v55, %v81
    %v95 = vmul.f32 %v55, %v85
    %v96 = vmul.f32 %v60, %v81
    %v97 = vmul.f32 %v60, %v85
    %v98 = vmul.f32 %v65, %v81
    %v99 = vmul.f32 %v65, %v85
    %v100 = vmul.f32 %v70, %v81
    %v101 = vmul.f32 %v70, %v85
    %v102 = vmul.f32 %v75, %v81
    %v103 = vmul.f32 %v75, %v85
    %v104 = vld [vmem:[%s2] sm:$0xff]
    %v105 = vld [vmem:[%s2 + $0x8] sm:$0xff]
    %v106 = vld [vmem:[%s2 + $0x10] sm:$0xff]
    %v107 = vld [vmem:[%s2 + $0x18] sm:$0xff]
    %v108 = vld [vmem:[%s2 + $0x20] sm:$0xff]
    %v109 = vld [vmem:[%s2 + $0x28] sm:$0xff]
    %v110 = vld [vmem:[%s2 + $0x30] sm:$0xff]
    %v111 = vld [vmem:[%s2 + $0x38] sm:$0xff]
    %113 = vset.pattern.permute.xlu0 0
    %114 = vperm.xlu0 %113, %v104
    %v115 = vpop.permute.xlu0 %114
    %118 = vset.pattern.permute.xlu0 0
    %119 = vperm.xlu0 %118, %v105
    %v120 = vpop.permute.xlu0 %119
    %123 = vset.pattern.permute.xlu0 0
    %124 = vperm.xlu0 %123, %v106
    %v125 = vpop.permute.xlu0 %124
    %128 = vset.pattern.permute.xlu0 0
    %129 = vperm.xlu0 %128, %v107
    %v130 = vpop.permute.xlu0 %129
    %133 = vset.pattern.permute.xlu0 0
    %134 = vperm.xlu0 %133, %v108
    %v135 = vpop.permute.xlu0 %134
    %138 = vset.pattern.permute.xlu0 0
    %139 = vperm.xlu0 %138, %v109
    %v140 = vpop.permute.xlu0 %139
    %143 = vset.pattern.permute.xlu0 0
    %144 = vperm.xlu0 %143, %v110
    %v145 = vpop.permute.xlu0 %144
    %148 = vset.pattern.permute.xlu0 0
    %149 = vperm.xlu0 %148, %v111
    %v150 = vpop.permute.xlu0 %149
    %v152 = vadd.f32 %v88, %v115
    %v153 = vadd.f32 %v89, %v115
    %v154 = vadd.f32 %v90, %v120
    %v155 = vadd.f32 %v91, %v120
    %v156 = vadd.f32 %v92, %v125
    %v157 = vadd.f32 %v93, %v125
    %v158 = vadd.f32 %v94, %v130
    %v159 = vadd.f32 %v95, %v130
    %v160 = vadd.f32 %v96, %v135
    %v161 = vadd.f32 %v97, %v135
    %v162 = vadd.f32 %v98, %v140
    %v163 = vadd.f32 %v99, %v140
    %v164 = vadd.f32 %v100, %v145
    %v165 = vadd.f32 %v101, %v145
    %v166 = vadd.f32 %v102, %v150
    %v167 = vadd.f32 %v103, %v150
    %v168 = vmax.f32 %v152, 0.0
    %v169 = vmax.f32 %v153, 0.0
    %v170 = vmax.f32 %v154, 0.0
    %v171 = vmax.f32 %v155, 0.0
    %v172 = vmax.f32 %v156, 0.0
    %v173 = vmax.f32 %v157, 0.0
    %v174 = vmax.f32 %v158, 0.0
    %v175 = vmax.f32 %v159, 0.0
    %v176 = vmax.f32 %v160, 0.0
    %v177 = vmax.f32 %v161, 0.0
    %v178 = vmax.f32 %v162, 0.0
    %v179 = vmax.f32 %v163, 0.0
    %v180 = vmax.f32 %v164, 0.0
    %v181 = vmax.f32 %v165, 0.0
    %v182 = vmax.f32 %v166, 0.0
    %v183 = vmax.f32 %v167, 0.0
    %v184 = vld [vmem:[%s3] sm:$0xff]
    %v185 = vld [vmem:[%s3 + $0x8] sm:$0xff]
    %v186 = vld [vmem:[%s3 + $0x10] sm:$0xff]
    %v187 = vld [vmem:[%s3 + $0x18] sm:$0xff]
    %v188 = vld [vmem:[%s3 + $0x20] sm:$0xff]
    %v189 = vld [vmem:[%s3 + $0x28] sm:$0xff]
    %v190 = vld [vmem:[%s3 + $0x30] sm:$0xff]
    %v191 = vld [vmem:[%s3 + $0x38] sm:$0xff]
    %v192 = vld [vmem:[%s4] sm:$0xff]
    %v193 = vld [vmem:[%s4 + $0x8] sm:$0xff]
    %v194 = vld [vmem:[%s4 + $0x10] sm:$0xff]
    %v195 = vld [vmem:[%s4 + $0x18] sm:$0xff]
    %v196 = vld [vmem:[%s4 + $0x20] sm:$0xff]
    %v197 = vld [vmem:[%s4 + $0x28] sm:$0xff]
    %v198 = vld [vmem:[%s4 + $0x30] sm:$0xff]
    %v199 = vld [vmem:[%s4 + $0x38] sm:$0xff]
    %201 = vset.pattern.permute.xlu0 0
    %202 = vperm.xlu0 %201, %v192
    %v203 = vpop.permute.xlu0 %202
    %206 = vset.pattern.permute.xlu0 0
    %207 = vperm.xlu0 %206, %v193
    %v208 = vpop.permute.xlu0 %207
    %211 = vset.pattern.permute.xlu0 0
    %212 = vperm.xlu0 %211, %v194
    %v213 = vpop.permute.xlu0 %212
    %216 = vset.pattern.permute.xlu0 0
    %217 = vperm.xlu0 %216, %v195
    %v218 = vpop.permute.xlu0 %217
    %221 = vset.pattern.permute.xlu0 0
    %222 = vperm.xlu0 %221, %v196
    %v223 = vpop.permute.xlu0 %222
    %226 = vset.pattern.permute.xlu0 0
    %227 = vperm.xlu0 %226, %v197
    %v228 = vpop.permute.xlu0 %227
    %231 = vset.pattern.permute.xlu0 0
    %232 = vperm.xlu0 %231, %v198
    %v233 = vpop.permute.xlu0 %232
    %236 = vset.pattern.permute.xlu0 0
    %237 = vperm.xlu0 %236, %v199
    %v238 = vpop.permute.xlu0 %237
    %vm240 = vcmask 523264
    %v242 = vsel %vm240, %v184, 0
    %v245 = vsel %vm240, %v185, 0
    %v248 = vsel %vm240, %v186, 0
    %v251 = vsel %vm240, %v187, 0
    %v254 = vsel %vm240, %v188, 0
    %v257 = vsel %vm240, %v189, 0
    %v260 = vsel %vm240, %v190, 0
    %v263 = vsel %vm240, %v191, 0
    %265 = vmatprep.subr.mxu0 %v169
    %266 = vmatpush1.msra.mxu0 %v168
    %267 = vmatprep.subr.mxu0 %v171
    %268 = vmatpush1.msra.mxu0 %v170
    %269 = vmatprep.subr.mxu0 %v173
    %270 = vmatpush1.msra.mxu0 %v172
    %271 = vmatprep.subr.mxu0 %v175
    %272 = vmatpush1.msra.mxu0 %v174
    %273 = vmatprep.subr.mxu0 %v177
    %274 = vmatpush1.msra.mxu0 %v176
    %275 = vmatprep.subr.mxu0 %v179
    %276 = vmatpush1.msra.mxu0 %v178
    %277 = vmatprep.subr.mxu0 %v181
    %278 = vmatpush1.msra.mxu0 %v180
    %279 = vmatprep.subr.mxu0 %v183
    %280 = vmatpush1.msra.mxu0 %v182
    %281 = vmatprep.subr.mxu0 0.0
    %282 = vmatpush1.msra.mxu0 0.0
    %283 = vmatprep.subr.mxu0 0.0
    %284 = vmatpush1.msra.mxu0 0.0
    %285 = vmatprep.subr.mxu0 0.0
    %286 = vmatpush1.msra.mxu0 0.0
    %287 = vmatprep.subr.mxu0 0.0
    %288 = vmatpush1.msra.mxu0 0.0
    %289 = vmatprep.subr.mxu0 0.0
    %290 = vmatpush1.msra.mxu0 0.0
    %291 = vmatprep.subr.mxu0 0.0
    %292 = vmatpush1.msra.mxu0 0.0
    %293 = vmatprep.subr.mxu0 0.0
    %294 = vmatpush1.msra.mxu0 0.0
    %295 = vmatprep.subr.mxu0 0.0
    %296 = vmatpush1.msra.mxu0 0.0
    %297 = vmatprep.subr.mxu0 0.0
    %298 = vmatpush1.msra.mxu0 0.0
    %299 = vmatprep.subr.mxu0 0.0
    %300 = vmatpush1.msra.mxu0 0.0
    %301 = vmatprep.subr.mxu0 0.0
    %302 = vmatpush1.msra.mxu0 0.0
    %303 = vmatprep.subr.mxu0 0.0
    %304 = vmatpush1.msra.mxu0 0.0
    %305 = vmatprep.subr.mxu0 0.0
    %306 = vmatpush1.msra.mxu0 0.0
    %307 = vmatprep.subr.mxu0 0.0
    %308 = vmatpush1.msra.mxu0 0.0
    %309 = vmatprep.subr.mxu0 0.0
    %310 = vmatpush1.msra.mxu0 0.0
    %311 = vmatprep.subr.mxu0 0.0
    %312 = vmatpush1.msra.mxu0 0.0
    %313 = vmatprep.subr.mxu0 0.0
    %314 = vmatpush1.msra.mxu0 0.0
    %315 = vmatprep.subr.mxu0 0.0
    %316 = vmatpush1.msra.mxu0 0.0
    %317 = vmatprep.subr.mxu0 0.0
    %318 = vmatpush1.msra.mxu0 0.0
    %319 = vmatprep.subr.mxu0 0.0
    %320 = vmatpush1.msra.mxu0 0.0
    %321 = vmatprep.subr.mxu0 0.0
    %322 = vmatpush1.msra.mxu0 0.0
    %323 = vmatprep.subr.mxu0 0.0
    %324 = vmatpush1.msra.mxu0 0.0
    %325 = vmatprep.subr.mxu0 0.0
    %326 = vmatpush1.msra.mxu0 0.0
    %327 = vmatprep.subr.mxu0 0.0
    %328 = vmatpush1.msra.mxu0 0.0
    %329 = vmatprep.mubr.f32.mxu0 0.0
    %330 = vmatmul.mubr.f32.gmra.mrb[0].mxu0 %v242
    %v331 = vpop.f32.mrb[0].mxu0
    %v332 = vadd.f32 %v203, %v331
    %v333 = vpop.f32.mrb[0].mxu0
    %v334 = vadd.f32 %v203, %v333
    %335 = vmatprep.mubr.f32.mxu0 0.0
    %336 = vmatmul.mubr.f32.gmra.mrb[0].mxu0 %v245
    %v337 = vpop.f32.mrb[0].mxu0
    %v338 = vadd.f32 %v208, %v337
    %v339 = vpop.f32.mrb[0].mxu0
    %v340 = vadd.f32 %v208, %v339
    %341 = vmatprep.mubr.f32.mxu0 0.0
    %342 = vmatmul.mubr.f32.gmra.mrb[0].mxu0 %v248
    %v343 = vpop.f32.mrb[0].mxu0
    %v344 = vadd.f32 %v213, %v343
    %v345 = vpop.f32.mrb[0].mxu0
    %v346 = vadd.f32 %v213, %v345
    %347 = vmatprep.mubr.f32.mxu0 0.0
    %348 = vmatmul.mubr.f32.gmra.mrb[0].mxu0 %v251
    %v349 = vpop.f32.mrb[0].mxu0
    %v350 = vadd.f32 %v218, %v349
    %v351 = vpop.f32.mrb[0].mxu0
    %v352 = vadd.f32 %v218, %v351
    %353 = vmatprep.mubr.f32.mxu0 0.0
    %354 = vmatmul.mubr.f32.gmra.mrb[0].mxu0 %v254
    %v355 = vpop.f32.mrb[0].mxu0
    %v356 = vadd.f32 %v223, %v355
    %v357 = vpop.f32.mrb[0].mxu0
    %v358 = vadd.f32 %v223, %v357
    %359 = vmatprep.mubr.f32.mxu0 0.0
    %360 = vmatmul.mubr.f32.gmra.mrb[0].mxu0 %v257
    %v361 = vpop.f32.mrb[0].mxu0
    %v362 = vadd.f32 %v228, %v361
    %v363 = vpop.f32.mrb[0].mxu0
    %v364 = vadd.f32 %v228, %v363
    %365 = vmatprep.mubr.f32.mxu0 0.0
    %366 = vmatmul.mubr.f32.gmra.mrb[0].mxu0 %v260
    %v367 = vpop.f32.mrb[0].mxu0
    %v368 = vadd.f32 %v233, %v367
    %v369 = vpop.f32.mrb[0].mxu0
    %v370 = vadd.f32 %v233, %v369
    %371 = vmatprep.mubr.f32.mxu0 0.0
    %372 = vmatmul.mubr.f32.gmra.mrb[0].mxu0 %v263
    %v373 = vpop.f32.mrb[0].mxu0
    %v374 = vadd.f32 %v238, %v373
    %v375 = vpop.f32.mrb[0].mxu0
    %v376 = vadd.f32 %v238, %v375
    %377 = vdwg.mxu0
    %v378 = vmax.f32 %v332, 0.0
    %v379 = vmax.f32 %v334, 0.0
    %v380 = vmax.f32 %v338, 0.0
    %v381 = vmax.f32 %v340, 0.0
    %v382 = vmax.f32 %v344, 0.0
    %v383 = vmax.f32 %v346, 0.0
    %v384 = vmax.f32 %v350, 0.0
    %v385 = vmax.f32 %v352, 0.0
    %v386 = vmax.f32 %v356, 0.0
    %v387 = vmax.f32 %v358, 0.0
    %v388 = vmax.f32 %v362, 0.0
    %v389 = vmax.f32 %v364, 0.0
    %v390 = vmax.f32 %v368, 0.0
    %v391 = vmax.f32 %v370, 0.0
    %v392 = vmax.f32 %v374, 0.0
    %v393 = vmax.f32 %v376, 0.0
    %v394 = vld [vmem:[%s5] sm:$0xff]
    %v395 = vld [vmem:[%s5 + $0x8] sm:$0xff]
    %v396 = vld [vmem:[%s5 + $0x10] sm:$0xff]
    %v397 = vld [vmem:[%s5 + $0x18] sm:$0xff]
    %v398 = vld [vmem:[%s5 + $0x20] sm:$0xff]
    %v399 = vld [vmem:[%s5 + $0x28] sm:$0xff]
    %v400 = vld [vmem:[%s5 + $0x30] sm:$0xff]
    %v401 = vld [vmem:[%s5 + $0x38] sm:$0xff]
    %403 = vset.pattern.permute.xlu0 0
    %404 = vperm.xlu0 %403, %v394
    %v405 = vpop.permute.xlu0 %404
    %408 = vset.pattern.permute.xlu0 0
    %409 = vperm.xlu0 %408, %v395
    %v410 = vpop.permute.xlu0 %409
    %413 = vset.pattern.permute.xlu0 0
    %414 = vperm.xlu0 %413, %v396
    %v415 = vpop.permute.xlu0 %414
    %418 = vset.pattern.permute.xlu0 0
    %419 = vperm.xlu0 %418, %v397
    %v420 = vpop.permute.xlu0 %419
    %423 = vset.pattern.permute.xlu0 0
    %424 = vperm.xlu0 %423, %v398
    %v425 = vpop.permute.xlu0 %424
    %428 = vset.pattern.permute.xlu0 0
    %429 = vperm.xlu0 %428, %v399
    %v430 = vpop.permute.xlu0 %429
    %433 = vset.pattern.permute.xlu0 0
    %434 = vperm.xlu0 %433, %v400
    %v435 = vpop.permute.xlu0 %434
    %438 = vset.pattern.permute.xlu0 0
    %439 = vperm.xlu0 %438, %v401
    %v440 = vpop.permute.xlu0 %439
    %v442 = vmul.f32 %v405, %v378
    %v443 = vmul.f32 %v405, %v379
    %v444 = vmul.f32 %v410, %v380
    %v445 = vmul.f32 %v410, %v381
    %v446 = vmul.f32 %v415, %v382
    %v447 = vmul.f32 %v415, %v383
    %v448 = vmul.f32 %v420, %v384
    %v449 = vmul.f32 %v420, %v385
    %v450 = vmul.f32 %v425, %v386
    %v451 = vmul.f32 %v425, %v387
    %v452 = vmul.f32 %v430, %v388
    %v453 = vmul.f32 %v430, %v389
    %v454 = vmul.f32 %v435, %v390
    %v455 = vmul.f32 %v435, %v391
    %v456 = vmul.f32 %v440, %v392
    %v457 = vmul.f32 %v440, %v393
    %v458 = vadd.f32 %v442, %v444
    %v459 = vadd.f32 %v458, %v446
    %v460 = vadd.f32 %v459, %v448
    %v461 = vadd.f32 %v460, %v450
    %v462 = vadd.f32 %v461, %v452
    %v463 = vadd.f32 %v462, %v454
    %v464 = vadd.f32 %v463, %v456
    %v465 = vrot.slane %v464, 4
    %v466 = vadd.f32 %v464, %v465
    %v467 = vrot.slane %v466, 2
    %v468 = vadd.f32 %v466, %v467
    %v469 = vrot.slane %v468, 1
    %v470 = vadd.f32 %v468, %v469
    %v471 = vadd.f32 %v443, %v445
    %v472 = vadd.f32 %v471, %v447
    %v473 = vadd.f32 %v472, %v449
    %v474 = vadd.f32 %v473, %v451
    %v475 = vadd.f32 %v474, %v453
    %v476 = vadd.f32 %v475, %v455
    %v477 = vadd.f32 %v476, %v457
    %v478 = vrot.slane %v477, 4
    %v479 = vadd.f32 %v477, %v478
    %v480 = vrot.slane %v479, 2
    %v481 = vadd.f32 %v479, %v480
    %v482 = vrot.slane %v481, 1
    %v483 = vadd.f32 %v481, %v482
    %s484 = sld [smem:[#allocation2]]
    %v485 = vstv %s484
    %v486 = vadd.f32 %v470, %v485
    %v487 = vadd.f32 %v483, %v485
    %v490 = vcombine.low %v486, %v487
    %v492 = vunpack.c.l.s4 1966171168
    %v493 = vunpack.c.0.s8 %v492
    %v494 = vlaneseq
    %v495 = vshrl.u32 %v494, 7
    %v496 = vsub.s32 %v493, %v495
    %v497 = vrot.slane %v490, %v496
    %v499 = vunpack.c.l.s4 1966171168
    %v500 = vunpack.c.0.s8 %v499
    %v501 = vlaneseq
    %v502 = vshrl.u32 %v501, 7
    %v503 = vsub.s32 %v500, %v502
    %v504 = vrot.slane %v497, %v503
    %v506 = vlaneseq
    %vm507 = vcmp.ge.s32.totalorder %v506, 0
    %vm508 = vcmp.lt.s32.totalorder %v506, 256
    %vm509 = vmand %vm507, %vm508
    %510 = vst.msk [vmem:[#allocation3] sm:$0x3] %vm509, %v504
    // Predicated region
    $region30: #{tpu_custom_call.1} parent=1 // pred_check
      _
    $region31: #{tpu_custom_call.1} parent=1 // pred_check_branch
      %512 = sbr.rel (0) target = $region33
    $region32: #{tpu_custom_call.1} parent=1 // pred_region
      %s514 = ssub.s32 32, 32
      %515 = vsyncadd [#allocation4], %s514
      %s517 = sshll.u32 [#allocation3], 4
      %s518 = int_to_ptr.vmem [resolvable:$true] %s517
      %520 = dma.vmem_to_hbm [thread:$0]  %s518, 32, %s7, [#allocation4]
    $region33: #{tpu_custom_call.1} parent=1 // pred_fallthru
      _
    // Predicated region
    $region34: #{tpu_custom_call.1} parent=1 // pred_check
      _
    $region35: #{tpu_custom_call.1} parent=1 // pred_check_branch
      %522 = sbr.rel (0) target = $region37
    $region36: #{tpu_custom_call.1} parent=1 // pred_region
      %523 = dma.done [#allocation4], 32
    $region37: #{tpu_custom_call.1} parent=1 // pred_fallthru
      _
    %524 = vsyncpa [#allocation4], 1

</llo_original>
